<compile_context>
chip_gen: v7x
topology: tpu7x:2x2x1
jax: 0.10.0
libtpu: 0.0.40
codegen_flags: <defaults>
</compile_context>

<pallas_src>
import jax
import jax.numpy as jnp
from jax.experimental import pallas as pl
from jax.experimental.pallas import tpu as pltpu


# ---------------------------------------------------------------------------
# Pallas kernel: out = g * mask in the gradient's native dtype.
# ---------------------------------------------------------------------------
def _masked_grad_kernel(g_ref, m_ref, o_ref):
    o_ref[...] = g_ref[...] * m_ref[...]


def _vmem_capacity_bytes():
    try:
        info = pltpu.get_tpu_info()
        cap = getattr(info, "vmem_capacity_bytes", None)
        if cap:
            return int(cap)
    except Exception:
        pass
    return 64 * 1024 * 1024  # conservative default (v7x per-TC VMEM)


def _choose_layout(total, itemsize):
    """Lane-dense 2D layout with rows * lanes == total (no padding).

    Returns (rows, lanes, block_rows, grid_steps, vmem_limit), or None when
    `total` is not a multiple of 128 (ragged fallback handled by the caller).
    """
    if total % 128 != 0:
        return None

    # Largest lane width (multiple of 128) that divides `total` exactly and
    # still leaves >= 8 sublane rows; tiny tensors use a single full block.
    lanes = 128
    for cand in (2048, 1024, 512, 256, 128):
        if total % cand == 0 and total // cand >= 8:
            lanes = cand
            break
    rows = total // lanes

    # Generation-aware tile cap: 3 streams x 2 pipeline buffers must fit VMEM.
    vmem_cap = _vmem_capacity_bytes()
    if vmem_cap >= 128 * 1024 * 1024:           # v5e / v6e (128 MiB VMEM)
        max_tile_bytes = 8 * 1024 * 1024
        vmem_limit = 64 * 1024 * 1024
    else:                                        # v7x (64 MiB VMEM per TC)
        max_tile_bytes = 4 * 1024 * 1024
        vmem_limit = 40 * 1024 * 1024

    if rows < 8:
        # Single block equal to the full array dims (allowed by Mosaic).
        return rows, lanes, rows, 1, vmem_limit

    max_block_rows = max(8, max_tile_bytes // (lanes * itemsize))
    block_rows = min(rows, max_block_rows)
    block_rows = max(8, (block_rows // 8) * 8)   # multiple of 8 sublanes
    grid_steps = pl.cdiv(rows, block_rows)
    return rows, lanes, block_rows, grid_steps, vmem_limit


# ---------------------------------------------------------------------------
# Build an identity-forward / masked-backward function specialized to one
# (shape, dtype).  The mask is broadcast, cast to the grad dtype and laid out
# eagerly HERE (once), then closed over as a constant.
# ---------------------------------------------------------------------------
def _make_masked_grad_fn(mask, shape, dtype):
    shape = tuple(shape)
    dtype = jnp.dtype(dtype)
    total = 1
    for d in shape:
        total *= int(d)

    # Broadcast (handles (1,C,H,W) / per-channel masks like PyTorch's
    # `grad_output * mask`) and store in the gradient dtype.
    mask_full = jnp.broadcast_to(jnp.asarray(mask), shape).astype(dtype)
    layout = _choose_layout(total, dtype.itemsize)

    if layout is None:
        # TODO(synk): sizes not divisible by 128 fall back to a plain XLA
        # multiply instead of a Pallas bulk + tail split.
        masked_mul = None
        m2d = mask_full
    else:
        rows, lanes, block_rows, grid_steps, vmem_limit = layout
        m2d = jnp.reshape(mask_full, (rows, lanes))
        blk = pl.BlockSpec((block_rows, lanes), lambda i: (i, 0))
        masked_mul = pl.pallas_call(
            _masked_grad_kernel,
            out_shape=jax.ShapeDtypeStruct((rows, lanes), dtype),
            grid_spec=pltpu.PrefetchScalarGridSpec(
                num_scalar_prefetch=0,
                grid=(grid_steps,),
                in_specs=[blk, blk],
                out_specs=blk,
            ),
            compiler_params=pltpu.CompilerParams(
                dimension_semantics=("parallel",),
                vmem_limit_bytes=vmem_limit,
            ),
            # Overwrite the donated cotangent buffer with the masked grad.
            input_output_aliases={0: 0},
        )

    @jax.custom_vjp
    def masked_grad(x):
        return x                       # identity forward: no kernel, no copy

    def _fwd(x):
        return x, None

    def _bwd(_, g):
        if masked_mul is None:
            return (g * m2d,)
        g2d = jnp.reshape(g, m2d.shape)            # contiguous reshape: free
        out2d = masked_mul(g2d, m2d)
        return (jnp.reshape(out2d, shape),)

    masked_grad.defvjp(_fwd, _bwd)
    return masked_grad


# ---------------------------------------------------------------------------
# MaskedGradLayer: no parameters; forward identity, backward masks the grad.
# The mask gets no gradient (matching PyTorch's `None` return), so no zero
# cotangent is ever materialized for it.
# ---------------------------------------------------------------------------
class MaskedGradLayer:
    def __init__(self, mask, debug=False):
        self._mask = mask
        self._debug = debug  # TODO(synk): host-side debug print of |x|.mean() omitted.
        self._fns = {}       # (shape, dtype) -> specialized custom_vjp fn

    def _get_fn(self, shape, dtype):
        key = (tuple(shape), jnp.dtype(dtype).name)
        fn = self._fns.get(key)
        if fn is None:
            fn = _make_masked_grad_fn(self._mask, shape, dtype)
            self._fns[key] = fn
        return fn

    def __call__(self, x):
        return self._get_fn(x.shape, x.dtype)(x)


# ---------------------------------------------------------------------------
if __name__ == "__main__":
    key = jax.random.PRNGKey(0)
    kx, km = jax.random.split(key)

    # Small NCHW input consistent with the module's usage.
    x = jax.random.normal(kx, (2, 4, 16, 16), dtype=jnp.float32)
    # Deterministic binary mask, same shape as the input.
    mask = (jax.random.uniform(km, (2, 4, 16, 16)) > 0.5).astype(jnp.float32)

    layer = MaskedGradLayer(mask)

    # Forward: identity pass-through (no HBM traffic, no kernel).
    y = jax.block_until_ready(layer(x))
    assert y.shape == x.shape and y.dtype == x.dtype
    assert jnp.allclose(y, x), "forward must be identity"

    # Backward: Pallas masked-gradient kernel (eager and jitted).
    loss = lambda inp: jnp.sum(layer(inp))
    g = jax.block_until_ready(jax.grad(loss)(x))
    assert jnp.allclose(g, mask), "backward must be grad * mask"

    g_jit = jax.block_until_ready(jax.jit(jax.grad(loss))(x))
    assert jnp.allclose(g_jit, mask), "jitted backward must be grad * mask"

    # Broadcastable per-channel mask (PyTorch's `grad_output * mask` allows it).
    ch_mask = jnp.asarray([1.0, 0.0, 1.0, 0.0], jnp.float32).reshape(1, 4, 1, 1)
    layer_ch = MaskedGradLayer(ch_mask)
    g_ch = jax.block_until_ready(jax.grad(lambda t: jnp.sum(layer_ch(t)))(x))
    assert jnp.allclose(g_ch, jnp.broadcast_to(ch_mask, x.shape)), "broadcast mask"

    # bf16 gradients: mask ships in bf16, multiply stays in bf16 (exact for 0/1).
    x_bf16 = x.astype(jnp.bfloat16)
    layer_bf = MaskedGradLayer(mask)
    g_bf = jax.block_until_ready(
        jax.grad(lambda t: jnp.sum(layer_bf(t), dtype=jnp.float32))(x_bf16))
    assert g_bf.dtype == jnp.bfloat16
    assert jnp.allclose(g_bf.astype(jnp.float32), mask), "bf16 backward"

    print("KERNEL_OK")
</pallas_src>

<mosaic_0001>
module attributes {stable_mosaic.version = 11 : i64} {
  func.func @_masked_grad_kernel(%arg0: i32, %arg1: memref<8x256xf32, #tpu.memory_space<vmem>>, %arg2: memref<8x256xf32, #tpu.memory_space<vmem>>, %arg3: memref<8x256xf32, #tpu.memory_space<vmem>>) attributes {dimension_semantics = [#tpu.dimension_semantics<parallel>], iteration_bounds = array<i64: 1>, scalar_prefetch = 0 : i64, scratch_operands = 0 : i64, tpu.core_type = #tpu.core_type<tc>, window_params = [{transform_indices = @transform_0, window_bounds = array<i64: 8, 256>}, {transform_indices = @transform_1, window_bounds = array<i64: 8, 256>}, {transform_indices = @transform_2, window_bounds = array<i64: 8, 256>}]} {
    %c0 = arith.constant 0 : index
    %c0_0 = arith.constant 0 : index
    %0 = vector.load %arg1[%c0, %c0_0] : memref<8x256xf32, #tpu.memory_space<vmem>>, vector<8x256xf32>
    %c0_1 = arith.constant 0 : index
    %c0_2 = arith.constant 0 : index
    %1 = vector.load %arg2[%c0_1, %c0_2] : memref<8x256xf32, #tpu.memory_space<vmem>>, vector<8x256xf32>
    %2 = arith.mulf %0, %1 : vector<8x256xf32>
    %c0_3 = arith.constant 0 : index
    %c0_4 = arith.constant 0 : index
    %3 = vector.load %arg3[%c0_3, %c0_4] : memref<8x256xf32, #tpu.memory_space<vmem>>, vector<8x256xf32>
    tpu.vector_store %arg3[%c0_3, %c0_4], %2 {strides = array<i32>} : memref<8x256xf32, #tpu.memory_space<vmem>>, vector<8x256xf32>,
    return
  }
  func.func @transform_0(%arg0: i32) -> (i32, i32) {
    %c0_i32 = arith.constant 0 : i32
    %c0_i32_0 = arith.constant 0 : i32
    return %arg0, %c0_i32 : i32, i32
  }
  func.func @transform_1(%arg0: i32) -> (i32, i32) {
    %c0_i32 = arith.constant 0 : i32
    %c0_i32_0 = arith.constant 0 : i32
    return %arg0, %c0_i32 : i32, i32
  }
  func.func @transform_2(%arg0: i32) -> (i32, i32) {
    %c0_i32 = arith.constant 0 : i32
    %c0_i32_0 = arith.constant 0 : i32
    return %arg0, %c0_i32 : i32, i32
  }
}

</mosaic_0001>

<llo_original>
// kernel: tpu_custom_call.1
$region0: #{tpu_custom_call.1}
  #allocation0 [shape = 'u32[]', space=smem, size = 0x4, offset = 0x4, fixed_abs, tag = 'smem constant byte address 0x4 - core index']
  #allocation1 [shape = 'u32[144,128]{1,0:T(1,128)}', space=vmem, size = 0x12000, scoped, tag = 'internal scratch']
  %s0 = inlined_call_operand.hbm [shape: f32[8,256], index: 0, kind: input, shape index: {}, may-alias: {0,2}]
  %s1 = inlined_call_operand.vmem [shape: f32[8,256], index: 1, kind: input, shape index: {}]
  %s2 = inlined_call_operand.hbm [shape: f32[8,256], index: 2, kind: output, shape index: {}, may-alias: {0,2}]
  %s3 = sld [smem:[#allocation0]]
  $region22: #{tpu_custom_call.1} parent=0
    _
  %s5 = ssub.s32 1, %s3
  %s6 = scalar_select 0, %s5, %s3
  $region1: #{tpu_custom_call.1} parent=0
    #allocation2 [shape = 'u8[8192]{0}', space=vmem, size = 0x2000, scoped, tag = 'input window, operand 0, single buffered']
    #allocation3 [shape = 's32[1]{0}', space=sflag, size = 0x4, scoped, tag = 'scoped memory for tpu_custom_call.1']
    #allocation4 [shape = 's32[1]{0}', space=sflag, size = 0x4, scoped, tag = 'scoped memory for tpu_custom_call.1']
    #allocation5 [shape = 'u8[8192]{0}', space=vmem, size = 0x2000, scoped, tag = 'output window, operand 0, single buffered']
    %7 = vsyncpa [#allocation3], 0
    %8 = vsyncpa [#allocation4], 0
    // Predicated region
    $region2: #{tpu_custom_call.1} parent=1 // pred_check
      _
    $region3: #{tpu_custom_call.1} parent=1 // pred_check_branch
      %10 = sbr.rel (0) target = $region5
    $region4: #{tpu_custom_call.1} parent=1 // pred_region
      %s12 = ssub.s32 256, 256
      %13 = vsyncadd [#allocation3], %s12
      %s15 = sshll.u32 [#allocation2], 4
      %s16 = int_to_ptr.vmem [resolvable:$true] %s15
      %18 = dma.hbm_to_vmem [thread:$0]  %s0, 256, %s16, [#allocation3]
    $region5: #{tpu_custom_call.1} parent=1 // pred_fallthru
      _
    // Predicated region
    $region6: #{tpu_custom_call.1} parent=1 // pred_check
      _
    $region7: #{tpu_custom_call.1} parent=1 // pred_check_branch
      %20 = sbr.rel (0) target = $region9
    $region8: #{tpu_custom_call.1} parent=1 // pred_region
      _
    $region9: #{tpu_custom_call.1} parent=1 // pred_fallthru
      _
    // Predicated region
    $region10: #{tpu_custom_call.1} parent=1 // pred_check
      _
    $region11: #{tpu_custom_call.1} parent=1 // pred_check_branch
      %22 = sbr.rel (0) target = $region13
    $region12: #{tpu_custom_call.1} parent=1 // pred_region
      %23 = dma.done [#allocation3], 256
    $region13: #{tpu_custom_call.1} parent=1 // pred_fallthru
      _
    %v24 = vld [vmem:[#allocation2] sm:$0xff]
    %v25 = vld [vmem:[#allocation2 + $0x8] sm:$0xff]
    %v26 = vld [vmem:[%s1] sm:$0xff]
    %v27 = vld [vmem:[%s1 + $0x8] sm:$0xff]
    %v28 = vmul.f32 %v24, %v26
    %v29 = vmul.f32 %v25, %v27
    %30 = vst [vmem:[#allocation5] sm:$0xff] %v28
    %31 = vst [vmem:[#allocation5 + $0x8] sm:$0xff] %v29
    // Predicated region
    $region14: #{tpu_custom_call.1} parent=1 // pred_check
      _
    $region15: #{tpu_custom_call.1} parent=1 // pred_check_branch
      %33 = sbr.rel (0) target = $region17
    $region16: #{tpu_custom_call.1} parent=1 // pred_region
      %s35 = ssub.s32 256, 256
      %36 = vsyncadd [#allocation4], %s35
      %s38 = sshll.u32 [#allocation5], 4
      %s39 = int_to_ptr.vmem [resolvable:$true] %s38
      %41 = dma.vmem_to_hbm [thread:$0]  %s39, 256, %s2, [#allocation4]
    $region17: #{tpu_custom_call.1} parent=1 // pred_fallthru
      _
    // Predicated region
    $region18: #{tpu_custom_call.1} parent=1 // pred_check
      _
    $region19: #{tpu_custom_call.1} parent=1 // pred_check_branch
      %43 = sbr.rel (0) target = $region21
    $region20: #{tpu_custom_call.1} parent=1 // pred_region
      %44 = dma.done [#allocation4], 256
    $region21: #{tpu_custom_call.1} parent=1 // pred_fallthru
      _
    %45 = vsyncpa [#allocation3], 1
    %46 = vsyncpa [#allocation4], 1

</llo_original>
